<compile_context>
chip_gen: v6e
topology: v6e:2x2x1
jax: 0.10.0
libtpu: 0.0.40
codegen_flags: <defaults>
</compile_context>

<pallas_src>
import functools

import jax
import jax.numpy as jnp
from jax.experimental import pallas as pl
from jax.experimental.pallas import tpu as pltpu

D_IN = 128
D_H = 256
TM_DEFAULT = 512  # token tile (rows); sweep 256/512/1024 on real workloads


def _round_up(a, b):
    return ((a + b - 1) // b) * b


def feature_transfer_kernel(x_ref, w1_ref, b1_ref, w2_ref, b2_ref,
                            w3_ref, b3_ref, o_ref):
    x = x_ref[...]                       # (TM, 128) f32, kept for the residual
    xb = x.astype(jnp.bfloat16)          # bf16 view feeds the MXU only

    # fc1: (TM,128) @ (128,256) + b1 -> relu   (bf16 x bf16 -> f32 acc)
    h = jnp.dot(xb, w1_ref[...], preferred_element_type=jnp.float32)
    h = jnp.maximum(h + b1_ref[...], 0.0)

    # dropout(p=0.5) -> identity at inference time

    # fc2: (TM,256) @ (256,256) + b2 -> relu
    h = jnp.dot(h.astype(jnp.bfloat16), w2_ref[...],
                preferred_element_type=jnp.float32)
    h = jnp.maximum(h + b2_ref[...], 0.0)

    # fc3: (TM,256) @ (256,128) + b3 -> relu
    h = jnp.dot(h.astype(jnp.bfloat16), w3_ref[...],
                preferred_element_type=jnp.float32)
    h = jnp.maximum(h + b3_ref[...], 0.0)

    # residual add in f32, lane-dense (TM, 128) store
    o_ref[...] = (h + x).astype(o_ref.dtype)


@functools.partial(jax.jit, static_argnames=("tm",))
def feature_transfer(inputs, params, *, tm=None):
    """inputs: (batch, n_pairs, 128) float32."""
    b, p, d = inputs.shape
    assert d == D_IN
    m = b * p

    if tm is None:
        # Prefer big tiles (amortize ~0.35us/step overhead, fill the MXU),
        # but keep the grid >= 2 steps so v7x's two TensorCores both work.
        tm = min(TM_DEFAULT, max(8, _round_up(max(m // 2, 1), 8)))

    m_pad = _round_up(m, tm)
    grid = (m_pad // tm,)

    x = inputs.reshape(m, d).astype(jnp.float32)
    if m_pad != m:
        x = jnp.pad(x, ((0, m_pad - m), (0, 0)))

    w1, b1, w2, b2, w3, b3 = params
    # Convert weights to bf16 once outside the kernel (native MXU dtype,
    # halves weight DMA).  Biases stay f32 for the VPU adds.
    w1 = w1.astype(jnp.bfloat16)
    w2 = w2.astype(jnp.bfloat16)
    w3 = w3.astype(jnp.bfloat16)

    weight_elems = D_IN * D_H + D_H * D_H + D_H * D_IN
    cost = pl.CostEstimate(
        flops=2 * m_pad * weight_elems,
        transcendentals=0,
        bytes_accessed=m_pad * D_IN * 4 * 2            # x in + out (f32)
        + weight_elems * 2                             # bf16 weights
        + (D_H + D_H + D_IN) * 4,                      # f32 biases
    )

    out = pl.pallas_call(
        feature_transfer_kernel,
        out_shape=jax.ShapeDtypeStruct((m_pad, D_IN), inputs.dtype),
        grid_spec=pltpu.PrefetchScalarGridSpec(
            num_scalar_prefetch=0,
            grid=grid,
            in_specs=[
                pl.BlockSpec((tm, D_IN), lambda i: (i, 0)),     # x tile
                pl.BlockSpec((D_IN, D_H), lambda i: (0, 0)),    # w1 (bf16)
                pl.BlockSpec((1, D_H), lambda i: (0, 0)),       # b1
                pl.BlockSpec((D_H, D_H), lambda i: (0, 0)),     # w2 (bf16)
                pl.BlockSpec((1, D_H), lambda i: (0, 0)),       # b2
                pl.BlockSpec((D_H, D_IN), lambda i: (0, 0)),    # w3 (bf16)
                pl.BlockSpec((1, D_IN), lambda i: (0, 0)),      # b3
            ],
            out_specs=pl.BlockSpec((tm, D_IN), lambda i: (i, 0)),
        ),
        compiler_params=pltpu.CompilerParams(
            dimension_semantics=("parallel",)),
        cost_estimate=cost,
    )(x, w1, b1, w2, b2, w3, b3)

    if m_pad != m:
        out = out[:m]
    return out.reshape(b, p, d)


def init_params(key):
    """Deterministic Linear params, PyTorch-style uniform(-1/sqrt(fan_in), ...)."""
    ks = jax.random.split(key, 6)

    def lin(kw, kb, fan_in, fan_out):
        bound = 1.0 / jnp.sqrt(fan_in)
        w = jax.random.uniform(kw, (fan_in, fan_out), jnp.float32, -bound, bound)
        b = jax.random.uniform(kb, (1, fan_out), jnp.float32, -bound, bound)
        return w, b

    w1, b1 = lin(ks[0], ks[1], D_IN, D_H)
    w2, b2 = lin(ks[2], ks[3], D_H, D_H)
    w3, b3 = lin(ks[4], ks[5], D_H, D_IN)
    return (w1, b1, w2, b2, w3, b3)


def _ref(inputs, params):
    w1, b1, w2, b2, w3, b3 = params
    b, p, d = inputs.shape
    x = inputs.reshape(b * p, d)
    h = jnp.maximum(x @ w1 + b1, 0.0)
    h = jnp.maximum(h @ w2 + b2, 0.0)
    h = jnp.maximum(h @ w3 + b3, 0.0)
    return (h + x).reshape(b, p, d)


if __name__ == "__main__":
    key = jax.random.PRNGKey(0)
    k_in, k_par = jax.random.split(key)

    # M = 24 tokens: exercises adaptive tile selection, the padded tail,
    # and a 2-step grid.
    batch, n_pairs = 2, 12
    inputs = jax.random.normal(k_in, (batch, n_pairs, D_IN), jnp.float32)
    params = init_params(k_par)

    out = feature_transfer(inputs, params)
    out = jax.block_until_ready(out)

    ref = _ref(inputs, params)
    assert out.shape == (batch, n_pairs, D_IN)
    # bf16 matmul operands (f32 accumulation) -> relaxed tolerance vs f32 ref.
    assert jnp.allclose(out, ref, atol=5e-2, rtol=5e-2), (
        float(jnp.max(jnp.abs(out - ref))))

    print("KERNEL_OK")
</pallas_src>

<mosaic_0001>
module attributes {stable_mosaic.version = 11 : i64} {
  func.func @feature_transfer_kernel(%arg0: i32, %arg1: memref<16x128xf32, #tpu.memory_space<vmem>>, %arg2: memref<128x256xbf16, #tpu.memory_space<vmem>>, %arg3: memref<1x256xf32, #tpu.memory_space<vmem>>, %arg4: memref<256x256xbf16, #tpu.memory_space<vmem>>, %arg5: memref<1x256xf32, #tpu.memory_space<vmem>>, %arg6: memref<256x128xbf16, #tpu.memory_space<vmem>>, %arg7: memref<1x128xf32, #tpu.memory_space<vmem>>, %arg8: memref<16x128xf32, #tpu.memory_space<vmem>>) attributes {dimension_semantics = [#tpu.dimension_semantics<parallel>], iteration_bounds = array<i64: 2>, scalar_prefetch = 0 : i64, scratch_operands = 0 : i64, tpu.core_type = #tpu.core_type<tc>, window_params = [{transform_indices = @transform_0, window_bounds = array<i64: 16, 128>}, {pipeline_mode = #tpu.pipeline_mode<synchronous>, transform_indices = @transform_1, window_bounds = array<i64: 128, 256>}, {pipeline_mode = #tpu.pipeline_mode<synchronous>, transform_indices = @transform_2, window_bounds = array<i64: 1, 256>}, {pipeline_mode = #tpu.pipeline_mode<synchronous>, transform_indices = @transform_3, window_bounds = array<i64: 256, 256>}, {pipeline_mode = #tpu.pipeline_mode<synchronous>, transform_indices = @transform_4, window_bounds = array<i64: 1, 256>}, {pipeline_mode = #tpu.pipeline_mode<synchronous>, transform_indices = @transform_5, window_bounds = array<i64: 256, 128>}, {pipeline_mode = #tpu.pipeline_mode<synchronous>, transform_indices = @transform_6, window_bounds = array<i64: 1, 128>}, {transform_indices = @transform_7, window_bounds = array<i64: 16, 128>}]} {
    %c0 = arith.constant 0 : index
    %c0_0 = arith.constant 0 : index
    %0 = vector.load %arg1[%c0, %c0_0] : memref<16x128xf32, #tpu.memory_space<vmem>>, vector<16x128xf32>
    %1 = arith.truncf %0 : vector<16x128xf32> to vector<16x128xbf16>
    %c0_1 = arith.constant 0 : index
    %c0_2 = arith.constant 0 : index
    %2 = vector.load %arg2[%c0_1, %c0_2] : memref<128x256xbf16, #tpu.memory_space<vmem>>, vector<128x256xbf16>
    %cst = arith.constant dense<0.000000e+00> : vector<16x256xf32>
    %3 = tpu.matmul %1, %2, %cst {dimension_numbers = #tpu.dot_dimension_numbers<[1], [0], [0], [1], [0, 0, 1, 1], [], []>} : vector<16x128xbf16>, vector<128x256xbf16>, vector<16x256xf32> -> vector<16x256xf32>
    %c0_3 = arith.constant 0 : index
    %c0_4 = arith.constant 0 : index
    %4 = vector.load %arg3[%c0_3, %c0_4] : memref<1x256xf32, #tpu.memory_space<vmem>>, vector<1x256xf32>
    %5 = vector.broadcast %4 : vector<1x256xf32> to vector<16x256xf32>
    %6 = arith.addf %3, %5 : vector<16x256xf32>
    %cst_5 = arith.constant 0.000000e+00 : f32
    %7 = vector.broadcast %cst_5 : f32 to vector<16x256xf32>
    %8 = arith.maximumf %6, %7 : vector<16x256xf32>
    %9 = arith.truncf %8 : vector<16x256xf32> to vector<16x256xbf16>
    %c0_6 = arith.constant 0 : index
    %c0_7 = arith.constant 0 : index
    %10 = vector.load %arg4[%c0_6, %c0_7] : memref<256x256xbf16, #tpu.memory_space<vmem>>, vector<256x256xbf16>
    %cst_8 = arith.constant dense<0.000000e+00> : vector<16x256xf32>
    %11 = tpu.matmul %9, %10, %cst_8 {dimension_numbers = #tpu.dot_dimension_numbers<[1], [0], [0], [1], [0, 0, 1, 1], [], []>} : vector<16x256xbf16>, vector<256x256xbf16>, vector<16x256xf32> -> vector<16x256xf32>
    %c0_9 = arith.constant 0 : index
    %c0_10 = arith.constant 0 : index
    %12 = vector.load %arg5[%c0_9, %c0_10] : memref<1x256xf32, #tpu.memory_space<vmem>>, vector<1x256xf32>
    %13 = vector.broadcast %12 : vector<1x256xf32> to vector<16x256xf32>
    %14 = arith.addf %11, %13 : vector<16x256xf32>
    %cst_11 = arith.constant 0.000000e+00 : f32
    %15 = vector.broadcast %cst_11 : f32 to vector<16x256xf32>
    %16 = arith.maximumf %14, %15 : vector<16x256xf32>
    %17 = arith.truncf %16 : vector<16x256xf32> to vector<16x256xbf16>
    %c0_12 = arith.constant 0 : index
    %c0_13 = arith.constant 0 : index
    %18 = vector.load %arg6[%c0_12, %c0_13] : memref<256x128xbf16, #tpu.memory_space<vmem>>, vector<256x128xbf16>
    %cst_14 = arith.constant dense<0.000000e+00> : vector<16x128xf32>
    %19 = tpu.matmul %17, %18, %cst_14 {dimension_numbers = #tpu.dot_dimension_numbers<[1], [0], [0], [1], [0, 0, 1, 1], [], []>} : vector<16x256xbf16>, vector<256x128xbf16>, vector<16x128xf32> -> vector<16x128xf32>
    %c0_15 = arith.constant 0 : index
    %c0_16 = arith.constant 0 : index
    %20 = vector.load %arg7[%c0_15, %c0_16] : memref<1x128xf32, #tpu.memory_space<vmem>>, vector<1x128xf32>
    %21 = vector.broadcast %20 : vector<1x128xf32> to vector<16x128xf32>
    %22 = arith.addf %19, %21 : vector<16x128xf32>
    %cst_17 = arith.constant 0.000000e+00 : f32
    %23 = vector.broadcast %cst_17 : f32 to vector<16x128xf32>
    %24 = arith.maximumf %22, %23 : vector<16x128xf32>
    %25 = arith.addf %24, %0 : vector<16x128xf32>
    %c0_18 = arith.constant 0 : index
    %c0_19 = arith.constant 0 : index
    %26 = vector.load %arg8[%c0_18, %c0_19] : memref<16x128xf32, #tpu.memory_space<vmem>>, vector<16x128xf32>
    tpu.vector_store %arg8[%c0_18, %c0_19], %25 {strides = array<i32>} : memref<16x128xf32, #tpu.memory_space<vmem>>, vector<16x128xf32>,
    return
  }
  func.func @transform_0(%arg0: i32) -> (i32, i32) {
    %c0_i32 = arith.constant 0 : i32
    %c0_i32_0 = arith.constant 0 : i32
    return %arg0, %c0_i32 : i32, i32
  }
  func.func @transform_1(%arg0: i32) -> (i32, i32) {
    %c0_i32 = arith.constant 0 : i32
    %c0_i32_0 = arith.constant 0 : i32
    %c0_i32_1 = arith.constant 0 : i32
    return %c0_i32, %c0_i32_0 : i32, i32
  }
  func.func @transform_2(%arg0: i32) -> (i32, i32) {
    %c0_i32 = arith.constant 0 : i32
    %c0_i32_0 = arith.constant 0 : i32
    %c0_i32_1 = arith.constant 0 : i32
    return %c0_i32, %c0_i32_0 : i32, i32
  }
  func.func @transform_3(%arg0: i32) -> (i32, i32) {
    %c0_i32 = arith.constant 0 : i32
    %c0_i32_0 = arith.constant 0 : i32
    %c0_i32_1 = arith.constant 0 : i32
    return %c0_i32, %c0_i32_0 : i32, i32
  }
  func.func @transform_4(%arg0: i32) -> (i32, i32) {
    %c0_i32 = arith.constant 0 : i32
    %c0_i32_0 = arith.constant 0 : i32
    %c0_i32_1 = arith.constant 0 : i32
    return %c0_i32, %c0_i32_0 : i32, i32
  }
  func.func @transform_5(%arg0: i32) -> (i32, i32) {
    %c0_i32 = arith.constant 0 : i32
    %c0_i32_0 = arith.constant 0 : i32
    %c0_i32_1 = arith.constant 0 : i32
    return %c0_i32, %c0_i32_0 : i32, i32
  }
  func.func @transform_6(%arg0: i32) -> (i32, i32) {
    %c0_i32 = arith.constant 0 : i32
    %c0_i32_0 = arith.constant 0 : i32
    %c0_i32_1 = arith.constant 0 : i32
    return %c0_i32, %c0_i32_0 : i32, i32
  }
  func.func @transform_7(%arg0: i32) -> (i32, i32) {
    %c0_i32 = arith.constant 0 : i32
    %c0_i32_0 = arith.constant 0 : i32
    return %arg0, %c0_i32 : i32, i32
  }
}

</mosaic_0001>

<llo_original>
// kernel: feature_transfer.1
$region0: #{feature_transfer.1}
  #allocation0 [shape = 'u32[]', space=smem, size = 0x4, offset = 0x4, fixed_abs, tag = 'smem constant byte address 0x4 - core index']
  #allocation1 [shape = 'u32[144,128]{1,0:T(1,128)}', space=vmem, size = 0x12000, scoped, tag = 'internal scratch']
  %s0 = inlined_call_operand.vmem [shape: f32[32,128], index: 0, kind: input, shape index: {}]
  %s1 = inlined_call_operand.vmem [shape: bf16[128,256], index: 1, kind: input, shape index: {}]
  %s2 = inlined_call_operand.vmem [shape: f32[1,256], index: 2, kind: input, shape index: {}]
  %s3 = inlined_call_operand.vmem [shape: bf16[256,256], index: 3, kind: input, shape index: {}]
  %s4 = inlined_call_operand.vmem [shape: f32[1,256], index: 4, kind: input, shape index: {}]
  %s5 = inlined_call_operand.vmem [shape: bf16[256,128], index: 5, kind: input, shape index: {}]
  %s6 = inlined_call_operand.vmem [shape: f32[1,128], index: 6, kind: input, shape index: {}]
  %s7 = inlined_call_operand.vmem [shape: f32[32,128], index: 7, kind: output, shape index: {}]
  %s8 = sld [smem:[#allocation0]]
  $region61: #{feature_transfer.1} parent=0
    _
  %s10 = ssub.s32 1, %s8
  %s11 = scalar_select 0, %s10, %s8
  loop: start=0, step=1, limit=4
  $region2: #{feature_transfer.1} parent=0 // loop_pre_header
    _
  $region3: #{feature_transfer.1} parent=0 // loop_header
    %s13 = sphi 0, %s17
    %p14 = scmp.ge.s32.totalorder %s13, 4
    %s23 = sphi 0, %s25
    %s26 = sphi 0, %s23
    %s27 = sphi 0, %s26
    %s43 = sphi 0, %s27
    %s47 = sphi 0, %s47
    %s49 = sphi 0, %s47
    %s50 = sphi 0, %s49
    %s64 = sphi 0, %s50
    %s68 = sphi 0, %s68
    %s70 = sphi 0, %s68
    %s71 = sphi 0, %s70
    %s85 = sphi 0, %s71
    %s89 = sphi 0, %s89
    %s91 = sphi 0, %s89
    %s92 = sphi 0, %s91
    %s106 = sphi 0, %s92
    %s110 = sphi 0, %s110
    %s112 = sphi 0, %s110
    %s113 = sphi 0, %s112
    %s127 = sphi 0, %s113
    %s131 = sphi 0, %s131
    %s133 = sphi 0, %s131
    %s134 = sphi 0, %s133
    %s148 = sphi 0, %s134
    %s152 = sphi 0, %s152
    %s154 = sphi 0, %s152
    %s155 = sphi 0, %s154
    %s169 = sphi 0, %s155
    %s175 = sphi 0, %s177
    %s178 = sphi 0, %s175
    %s179 = sphi 0, %s178
    %s195 = sphi 0, %s179
  $region4: #{feature_transfer.1} parent=0 // loop_header_branch
    %16 = sbr.rel (%p14) target = $region8
  $region5: #{feature_transfer.1} parent=0 // loop_body
    %s18 = ssub.s32 %s13, 1
    %s19 = ssub.s32 %s13, 2
    %s20 = sadd.s32 %s13, 1
    %s21 = ssub.s32 %s13, %s20
    %p22 = scmp.eq.s32.totalorder %s21, 0
    %s24 = sadd.s32 %s23, 1
    %s25 = scalar_select %p22, %s23, %s24
    %p28 = pneg %p22
    %p29 = scmp.eq.s32.totalorder %s13, 1
    %p30 = por %p28, %p29
    %p31 = scmp.ne.s32.totalorder %s23, %s26
    %p32 = scmp.eq.s32.totalorder %s13, 0
    %p33 = por %p31, %p32
    %p34 = scmp.ne.s32.totalorder %s23, %s26
    %p35 = scmp.eq.s32.totalorder %s18, 1
    %p36 = por %p34, %p35
    %p37 = scmp.ne.s32.totalorder %s26, %s27
    %p38 = scmp.eq.s32.totalorder %s18, 0
    %p39 = por %p37, %p38
    %p40 = scmp.ne.s32.totalorder %s26, %s27
    %p41 = scmp.eq.s32.totalorder %s19, 1
    %p42 = por %p40, %p41
    %p44 = scmp.ne.s32.totalorder %s27, %s43
    %p45 = scmp.eq.s32.totalorder %s19, 0
    %p46 = por %p44, %p45
    %s48 = sadd.s32 %s47, 1
    %p51 = scmp.eq.s32.totalorder %s13, 1
    %p52 = scmp.ne.s32.totalorder %s47, %s49
    %p53 = scmp.eq.s32.totalorder %s13, 0
    %p54 = por %p52, %p53
    %p55 = scmp.ne.s32.totalorder %s47, %s49
    %p56 = scmp.eq.s32.totalorder %s18, 1
    %p57 = por %p55, %p56
    %p58 = scmp.ne.s32.totalorder %s49, %s50
    %p59 = scmp.eq.s32.totalorder %s18, 0
    %p60 = por %p58, %p59
    %p61 = scmp.ne.s32.totalorder %s49, %s50
    %p62 = scmp.eq.s32.totalorder %s19, 1
    %p63 = por %p61, %p62
    %p65 = scmp.ne.s32.totalorder %s50, %s64
    %p66 = scmp.eq.s32.totalorder %s19, 0
    %p67 = por %p65, %p66
    %s69 = sadd.s32 %s68, 1
    %p72 = scmp.eq.s32.totalorder %s13, 1
    %p73 = scmp.ne.s32.totalorder %s68, %s70
    %p74 = scmp.eq.s32.totalorder %s13, 0
    %p75 = por %p73, %p74
    %p76 = scmp.ne.s32.totalorder %s68, %s70
    %p77 = scmp.eq.s32.totalorder %s18, 1
    %p78 = por %p76, %p77
    %p79 = scmp.ne.s32.totalorder %s70, %s71
    %p80 = scmp.eq.s32.totalorder %s18, 0
    %p81 = por %p79, %p80
    %p82 = scmp.ne.s32.totalorder %s70, %s71
    %p83 = scmp.eq.s32.totalorder %s19, 1
    %p84 = por %p82, %p83
    %p86 = scmp.ne.s32.totalorder %s71, %s85
    %p87 = scmp.eq.s32.totalorder %s19, 0
    %p88 = por %p86, %p87
    %s90 = sadd.s32 %s89, 1
    %p93 = scmp.eq.s32.totalorder %s13, 1
    %p94 = scmp.ne.s32.totalorder %s89, %s91
    %p95 = scmp.eq.s32.totalorder %s13, 0
    %p96 = por %p94, %p95
    %p97 = scmp.ne.s32.totalorder %s89, %s91
    %p98 = scmp.eq.s32.totalorder %s18, 1
    %p99 = por %p97, %p98
    %p100 = scmp.ne.s32.totalorder %s91, %s92
    %p101 = scmp.eq.s32.totalorder %s18, 0
    %p102 = por %p100, %p101
    %p103 = scmp.ne.s32.totalorder %s91, %s92
    %p104 = scmp.eq.s32.totalorder %s19, 1
    %p105 = por %p103, %p104
    %p107 = scmp.ne.s32.totalorder %s92, %s106
    %p108 = scmp.eq.s32.totalorder %s19, 0
    %p109 = por %p107, %p108
    %s111 = sadd.s32 %s110, 1
    %p114 = scmp.eq.s32.totalorder %s13, 1
    %p115 = scmp.ne.s32.totalorder %s110, %s112
    %p116 = scmp.eq.s32.totalorder %s13, 0
    %p117 = por %p115, %p116
    %p118 = scmp.ne.s32.totalorder %s110, %s112
    %p119 = scmp.eq.s32.totalorder %s18, 1
    %p120 = por %p118, %p119
    %p121 = scmp.ne.s32.totalorder %s112, %s113
    %p122 = scmp.eq.s32.totalorder %s18, 0
    %p123 = por %p121, %p122
    %p124 = scmp.ne.s32.totalorder %s112, %s113
    %p125 = scmp.eq.s32.totalorder %s19, 1
    %p126 = por %p124, %p125
    %p128 = scmp.ne.s32.totalorder %s113, %s127
    %p129 = scmp.eq.s32.totalorder %s19, 0
    %p130 = por %p128, %p129
    %s132 = sadd.s32 %s131, 1
    %p135 = scmp.eq.s32.totalorder %s13, 1
    %p136 = scmp.ne.s32.totalorder %s131, %s133
    %p137 = scmp.eq.s32.totalorder %s13, 0
    %p138 = por %p136, %p137
    %p139 = scmp.ne.s32.totalorder %s131, %s133
    %p140 = scmp.eq.s32.totalorder %s18, 1
    %p141 = por %p139, %p140
    %p142 = scmp.ne.s32.totalorder %s133, %s134
    %p143 = scmp.eq.s32.totalorder %s18, 0
    %p144 = por %p142, %p143
    %p145 = scmp.ne.s32.totalorder %s133, %s134
    %p146 = scmp.eq.s32.totalorder %s19, 1
    %p147 = por %p145, %p146
    %p149 = scmp.ne.s32.totalorder %s134, %s148
    %p150 = scmp.eq.s32.totalorder %s19, 0
    %p151 = por %p149, %p150
    %s153 = sadd.s32 %s152, 1
    %p156 = scmp.eq.s32.totalorder %s13, 1
    %p157 = scmp.ne.s32.totalorder %s152, %s154
    %p158 = scmp.eq.s32.totalorder %s13, 0
    %p159 = por %p157, %p158
    %p160 = scmp.ne.s32.totalorder %s152, %s154
    %p161 = scmp.eq.s32.totalorder %s18, 1
    %p162 = por %p160, %p161
    %p163 = scmp.ne.s32.totalorder %s154, %s155
    %p164 = scmp.eq.s32.totalorder %s18, 0
    %p165 = por %p163, %p164
    %p166 = scmp.ne.s32.totalorder %s154, %s155
    %p167 = scmp.eq.s32.totalorder %s19, 1
    %p168 = por %p166, %p167
    %p170 = scmp.ne.s32.totalorder %s155, %s169
    %p171 = scmp.eq.s32.totalorder %s19, 0
    %p172 = por %p170, %p171
    %s173 = ssub.s32 %s13, %s20
    %p174 = scmp.eq.s32.totalorder %s173, 0
    %s176 = sadd.s32 %s175, 1
    %s177 = scalar_select %p174, %s175, %s176
    %p180 = pneg %p174
    %p181 = scmp.eq.s32.totalorder %s13, 1
    %p182 = por %p180, %p181
    %p183 = scmp.ne.s32.totalorder %s175, %s178
    %p184 = scmp.eq.s32.totalorder %s13, 0
    %p185 = por %p183, %p184
    %p186 = scmp.ne.s32.totalorder %s175, %s178
    %p187 = scmp.eq.s32.totalorder %s18, 1
    %p188 = por %p186, %p187
    %p189 = scmp.ne.s32.totalorder %s178, %s179
    %p190 = scmp.eq.s32.totalorder %s18, 0
    %p191 = por %p189, %p190
    %p192 = scmp.ne.s32.totalorder %s178, %s179
    %p193 = scmp.eq.s32.totalorder %s19, 1
    %p194 = por %p192, %p193
    %p196 = scmp.ne.s32.totalorder %s179, %s195
    %p197 = scmp.eq.s32.totalorder %s19, 0
    %p198 = por %p196, %p197
    %p199 = scmp.le.s32.totalorder 1, %s13
    %p200 = scmp.lt.s32.totalorder %s13, 3
    %p201 = pnand %p199, %p200
    %p202 = pneg %p201
    // Predicated region
    $region9: #{feature_transfer.1} parent=5 // pred_check
      _
    $region10: #{feature_transfer.1} parent=5 // pred_check_branch
      %204 = sbr.rel (%p201) target = $region12
    $region11: #{feature_transfer.1} parent=5 // pred_region
      %s205 = ssub.s32 %s13, 1
      // Predicated region
      $region13: #{feature_transfer.1} parent=11 // pred_check
        %p206 = pneg %p60
      $region14: #{feature_transfer.1} parent=11 // pred_check_branch
        %208 = sbr.rel (%p206) target = $region16
      $region15: #{feature_transfer.1} parent=11 // pred_region
        _
      $region16: #{feature_transfer.1} parent=11 // pred_fallthru
        _
      // Predicated region
      $region17: #{feature_transfer.1} parent=11 // pred_check
        %p209 = pneg %p81
      $region18: #{feature_transfer.1} parent=11 // pred_check_branch
        %211 = sbr.rel (%p209) target = $region20
      $region19: #{feature_transfer.1} parent=11 // pred_region
        _
      $region20: #{feature_transfer.1} parent=11 // pred_fallthru
        _
      // Predicated region
      $region21: #{feature_transfer.1} parent=11 // pred_check
        %p212 = pneg %p102
      $region22: #{feature_transfer.1} parent=11 // pred_check_branch
        %214 = sbr.rel (%p212) target = $region24
      $region23: #{feature_transfer.1} parent=11 // pred_region
        _
      $region24: #{feature_transfer.1} parent=11 // pred_fallthru
        _
      // Predicated region
      $region25: #{feature_transfer.1} parent=11 // pred_check
        %p215 = pneg %p123
      $region26: #{feature_transfer.1} parent=11 // pred_check_branch
        %217 = sbr.rel (%p215) target = $region28
      $region27: #{feature_transfer.1} parent=11 // pred_region
        _
      $region28: #{feature_transfer.1} parent=11 // pred_fallthru
        _
      // Predicated region
      $region29: #{feature_transfer.1} parent=11 // pred_check
        %p218 = pneg %p144
      $region30: #{feature_transfer.1} parent=11 // pred_check_branch
        %220 = sbr.rel (%p218) target = $region32
      $region31: #{feature_transfer.1} parent=11 // pred_region
        _
      $region32: #{feature_transfer.1} parent=11 // pred_fallthru
        _
      // Predicated region
      $region33: #{feature_transfer.1} parent=11 // pred_check
        %p221 = pneg %p165
      $region34: #{feature_transfer.1} parent=11 // pred_check_branch
        %223 = sbr.rel (%p221) target = $region36
      $region35: #{feature_transfer.1} parent=11 // pred_region
        _
      $region36: #{feature_transfer.1} parent=11 // pred_fallthru
        _
    $region12: #{feature_transfer.1} parent=5 // pred_fallthru
      _
    %p224 = scmp.lt.s32.totalorder %s13, 2
    // Predicated region
    $region37: #{feature_transfer.1} parent=5 // pred_check
      %p225 = pneg %p224
    $region38: #{feature_transfer.1} parent=5 // pred_check_branch
      %227 = sbr.rel (%p225) target = $region40
    $region39: #{feature_transfer.1} parent=5 // pred_region
      // Predicated region
      $region41: #{feature_transfer.1} parent=39 // pred_check
        %p228 = pneg %p33
      $region42: #{feature_transfer.1} parent=39 // pred_check_branch
        %230 = sbr.rel (%p228) target = $region44
      $region43: #{feature_transfer.1} parent=39 // pred_region
        %s231 = smul.u32 2, %s13
        %p232 = scmp.lt.s32.totalorder %s231, 3
        %s233 = scalar_select %p232, %s231, 3
        %s234 = smul.addr %s233, 8
        %s235 = scalar_lea.vmem %s0, %s234
        %s236 = smul.u32 2, %s13
      $region44: #{feature_transfer.1} parent=39 // pred_fallthru
        _
    $region40: #{feature_transfer.1} parent=5 // pred_fallthru
      _
    %p237 = scmp.le.s32.totalorder 1, %s13
    %p238 = scmp.lt.s32.totalorder %s13, 3
    %p239 = pnand %p237, %p238
    %p240 = pneg %p239
    // Predicated region
    $region45: #{feature_transfer.1} parent=5 // pred_check
      _
    $region46: #{feature_transfer.1} parent=5 // pred_check_branch
      %242 = sbr.rel (%p239) target = $region48
    $region47: #{feature_transfer.1} parent=5 // pred_region
      %s243 = ssub.s32 %s13, 1
      %s244 = smul.u32 2, %s18
      %p245 = scmp.lt.s32.totalorder %s244, 3
      %s246 = scalar_select %p245, %s244, 3
      %s247 = smul.addr %s246, 8
      %s248 = scalar_lea.vmem %s0, %s247
      %p249 = pneg %p39
      %p250 = pneg %p36
      %p251 = pneg %p60
      %p252 = pneg %p57
      %p253 = pneg %p81
      %p254 = pneg %p78
      %p255 = pneg %p102
      %p256 = pneg %p99
      %p257 = pneg %p123
      %p258 = pneg %p120
      %p259 = pneg %p144
      %p260 = pneg %p141
      %p261 = pneg %p165
      %p262 = pneg %p162
      %p263 = pneg %p191
      %p264 = pneg %p188
      %s265 = smul.u32 2, %s18
      %p266 = scmp.lt.s32.totalorder %s265, 3
      %s267 = scalar_select %p266, %s265, 3
      %s268 = smul.addr %s267, 8
      %s269 = scalar_lea.vmem %s7, %s268
      %s270 = smul.u32 2, %s18
      %p271 = scmp.lt.s32.totalorder %s270, 3
      %s272 = scalar_select %p271, %s270, 3
      %s273 = smul.addr %s272, 8
      %s274 = scalar_lea.vmem %s0, %s273
      %s275 = smul.u32 2, %s18
      %s276 = smul.u32 2, %s18
      %p277 = scmp.lt.s32.totalorder %s276, 3
      %s278 = scalar_select %p277, %s276, 3
      %s279 = smul.addr %s278, 8
      %s280 = scalar_lea.vmem %s7, %s279
      %s281 = smul.u32 2, %s18
      %v283 = vld [vmem:[%s274] sm:$0xff]
      %v284 = vld [vmem:[%s274 + $0x8] sm:$0xff]
      %v285 = vpack.c.bf16 %v284, %v283
      %v286 = vld [vmem:[%s1] sm:$0xff]
      %v287 = vld [vmem:[%s1 + $0x8] sm:$0xff]
      %v288 = vld [vmem:[%s1 + $0x10] sm:$0xff]
      %v289 = vld [vmem:[%s1 + $0x18] sm:$0xff]
      %v290 = vld [vmem:[%s1 + $0x20] sm:$0xff]
      %v291 = vld [vmem:[%s1 + $0x28] sm:$0xff]
      %v292 = vld [vmem:[%s1 + $0x30] sm:$0xff]
      %v293 = vld [vmem:[%s1 + $0x38] sm:$0xff]
      %v294 = vld [vmem:[%s1 + $0x40] sm:$0xff]
      %v295 = vld [vmem:[%s1 + $0x48] sm:$0xff]
      %v296 = vld [vmem:[%s1 + $0x50] sm:$0xff]
      %v297 = vld [vmem:[%s1 + $0x58] sm:$0xff]
      %v298 = vld [vmem:[%s1 + $0x60] sm:$0xff]
      %v299 = vld [vmem:[%s1 + $0x68] sm:$0xff]
      %v300 = vld [vmem:[%s1 + $0x70] sm:$0xff]
      %v301 = vld [vmem:[%s1 + $0x78] sm:$0xff]
      %v302 = vld [vmem:[%s2] sm:$0x3]
      %v304 = vlaneseq
      %v305 = vshrl.u32 %v304, 7
      %v306 = vsub.s32 0, %v305
      %v307 = vrot.slane %v302, %v306
      %v308 = vlaneseq
      %v309 = vshrl.u32 %v308, 7
      %v310 = vsub.s32 1, %v309
      %v311 = vrot.slane %v302, %v310
      %v330 = vunpack.c.l.b16 %v286
      %v331 = vunpack.c.h.b16 %v286
      %v332 = vunpack.c.l.b16 %v287
      %v333 = vunpack.c.h.b16 %v287
      %v334 = vunpack.c.l.b16 %v288
      %v335 = vunpack.c.h.b16 %v288
      %v336 = vunpack.c.l.b16 %v289
      %v337 = vunpack.c.h.b16 %v289
      %v338 = vunpack.c.l.b16 %v290
      %v339 = vunpack.c.h.b16 %v290
      %v340 = vunpack.c.l.b16 %v291
      %v341 = vunpack.c.h.b16 %v291
      %v342 = vunpack.c.l.b16 %v292
      %v343 = vunpack.c.h.b16 %v292
      %v344 = vunpack.c.l.b16 %v293
      %v345 = vunpack.c.h.b16 %v293
      %v346 = vunpack.c.l.b16 %v294
      %v347 = vunpack.c.h.b16 %v294
      %v348 = vunpack.c.l.b16 %v295
      %v349 = vunpack.c.h.b16 %v295
      %v350 = vunpack.c.l.b16 %v296
      %v351 = vunpack.c.h.b16 %v296
      %v352 = vunpack.c.l.b16 %v297
      %v353 = vunpack.c.h.b16 %v297
      %v354 = vunpack.c.l.b16 %v298
      %v355 = vunpack.c.h.b16 %v298
      %v356 = vunpack.c.l.b16 %v299
      %v357 = vunpack.c.h.b16 %v299
      %v358 = vunpack.c.l.b16 %v300
      %v359 = vunpack.c.h.b16 %v300
      %v360 = vunpack.c.l.b16 %v301
      %v361 = vunpack.c.h.b16 %v301
      %v362 = vpack.c.b16 %v332, %v330
      %v363 = vpack.c.b16 %v333, %v331
      %v364 = vpack.c.b16 %v336, %v334
      %v365 = vpack.c.b16 %v337, %v335
      %v366 = vpack.c.b16 %v340, %v338
      %v367 = vpack.c.b16 %v341, %v339
      %v368 = vpack.c.b16 %v344, %v342
      %v369 = vpack.c.b16 %v345, %v343
      %v370 = vpack.c.b16 %v348, %v346
      %v371 = vpack.c.b16 %v349, %v347
      %v372 = vpack.c.b16 %v352, %v350
      %v373 = vpack.c.b16 %v353, %v351
      %v374 = vpack.c.b16 %v356, %v354
      %v375 = vpack.c.b16 %v357, %v355
      %v376 = vpack.c.b16 %v360, %v358
      %v377 = vpack.c.b16 %v361, %v359
      %394 = vmatprep.subr.bf16.mxu0 %v377
      %395 = vmatpush1.bf16.msra.mxu0 %v376
      %396 = vmatprep.subr.bf16.mxu0 %v375
      %397 = vmatpush1.bf16.msra.mxu0 %v374
      %398 = vmatprep.subr.bf16.mxu0 %v373
      %399 = vmatpush1.bf16.msra.mxu0 %v372
      %400 = vmatprep.subr.bf16.mxu0 %v371
      %401 = vmatpush1.bf16.msra.mxu0 %v370
      %402 = vmatprep.subr.bf16.mxu0 %v369
      %403 = vmatpush1.bf16.msra.mxu0 %v368
      %404 = vmatprep.subr.bf16.mxu0 %v367
      %405 = vmatpush1.bf16.msra.mxu0 %v366
      %406 = vmatprep.subr.bf16.mxu0 %v365
      %407 = vmatpush1.bf16.msra.mxu0 %v364
      %408 = vmatprep.subr.bf16.mxu0 %v363
      %409 = vmatpush1.bf16.msra.mxu0 %v362
      %410 = vmatprep.subr.bf16.mxu0 0
      %411 = vmatpush2.bf16.msra.mxu0 0
      %412 = vmatprep.subr.bf16.mxu0 0
      %413 = vmatpush2.bf16.msra.mxu0 0
      %414 = vmatprep.subr.bf16.mxu0 0
      %415 = vmatpush2.bf16.msra.mxu0 0
      %416 = vmatprep.subr.bf16.mxu0 0
      %417 = vmatpush2.bf16.msra.mxu0 0
      %418 = vmatprep.subr.bf16.mxu0 0
      %419 = vmatpush2.bf16.msra.mxu0 0
      %420 = vmatprep.subr.bf16.mxu0 0
      %421 = vmatpush2.bf16.msra.mxu0 0
      %422 = vmatprep.subr.bf16.mxu0 0
      %423 = vmatpush2.bf16.msra.mxu0 0
      %424 = vmatprep.subr.bf16.mxu0 0
      %425 = vmatpush2.bf16.msra.mxu0 0
      %426 = vmatprep.mubr.bf16.mxu0 0
      %427 = vmatmul.mubr.bf16.gmra.mxu0 %v285
      %v428 = vpop.f32.mrf.mxu0
      %v429 = vadd.f32 %v307, %v428
      %v430 = vpop.f32.mrf.mxu0
      %v431 = vadd.f32 %v311, %v430
      %v432 = vpop.f32.mrf.mxu0
      %v433 = vadd.f32 %v307, %v432
      %v434 = vpop.f32.mrf.mxu0
      %v435 = vadd.f32 %v311, %v434
      %436 = vdwg.mxu0
      %v437 = vmax.f32 %v429, 0.0
      %v438 = vmax.f32 %v431, 0.0
      %v439 = vmax.f32 %v433, 0.0
      %v440 = vmax.f32 %v435, 0.0
      %v441 = vpack.c.bf16 %v439, %v437
      %v442 = vpack.c.bf16 %v440, %v438
      %v443 = vld [vmem:[%s3] sm:$0xff]
      %v444 = vld [vmem:[%s3 + $0x8] sm:$0xff]
      %v445 = vld [vmem:[%s3 + $0x10] sm:$0xff]
      %v446 = vld [vmem:[%s3 + $0x18] sm:$0xff]
      %v447 = vld [vmem:[%s3 + $0x20] sm:$0xff]
      %v448 = vld [vmem:[%s3 + $0x28] sm:$0xff]
      %v449 = vld [vmem:[%s3 + $0x30] sm:$0xff]
      %v450 = vld [vmem:[%s3 + $0x38] sm:$0xff]
      %v451 = vld [vmem:[%s3 + $0x40] sm:$0xff]
      %v452 = vld [vmem:[%s3 + $0x48] sm:$0xff]
      %v453 = vld [vmem:[%s3 + $0x50] sm:$0xff]
      %v454 = vld [vmem:[%s3 + $0x58] sm:$0xff]
      %v455 = vld [vmem:[%s3 + $0x60] sm:$0xff]
      %v456 = vld [vmem:[%s3 + $0x68] sm:$0xff]
      %v457 = vld [vmem:[%s3 + $0x70] sm:$0xff]
      %v458 = vld [vmem:[%s3 + $0x78] sm:$0xff]
      %v459 = vld [vmem:[%s3 + $0x80] sm:$0xff]
      %v460 = vld [vmem:[%s3 + $0x88] sm:$0xff]
      %v461 = vld [vmem:[%s3 + $0x90] sm:$0xff]
      %v462 = vld [vmem:[%s3 + $0x98] sm:$0xff]
      %v463 = vld [vmem:[%s3 + $0xa0] sm:$0xff]
      %v464 = vld [vmem:[%s3 + $0xa8] sm:$0xff]
      %v465 = vld [vmem:[%s3 + $0xb0] sm:$0xff]
      %v466 = vld [vmem:[%s3 + $0xb8] sm:$0xff]
      %v467 = vld [vmem:[%s3 + $0xc0] sm:$0xff]
      %v468 = vld [vmem:[%s3 + $0xc8] sm:$0xff]
      %v469 = vld [vmem:[%s3 + $0xd0] sm:$0xff]
      %v470 = vld [vmem:[%s3 + $0xd8] sm:$0xff]
      %v471 = vld [vmem:[%s3 + $0xe0] sm:$0xff]
      %v472 = vld [vmem:[%s3 + $0xe8] sm:$0xff]
      %v473 = vld [vmem:[%s3 + $0xf0] sm:$0xff]
      %v474 = vld [vmem:[%s3 + $0xf8] sm:$0xff]
      %v475 = vld [vmem:[%s4] sm:$0x3]
      %v477 = vlaneseq
      %v478 = vshrl.u32 %v477, 7
      %v479 = vsub.s32 0, %v478
      %v480 = vrot.slane %v475, %v479
      %v481 = vlaneseq
      %v482 = vshrl.u32 %v481, 7
      %v483 = vsub.s32 1, %v482
      %v484 = vrot.slane %v475, %v483
      %v519 = vunpack.c.l.b16 %v443
      %v520 = vunpack.c.h.b16 %v443
      %v521 = vunpack.c.l.b16 %v444
      %v522 = vunpack.c.h.b16 %v444
      %v523 = vunpack.c.l.b16 %v445
      %v524 = vunpack.c.h.b16 %v445
      %v525 = vunpack.c.l.b16 %v446
      %v526 = vunpack.c.h.b16 %v446
      %v527 = vunpack.c.l.b16 %v447
      %v528 = vunpack.c.h.b16 %v447
      %v529 = vunpack.c.l.b16 %v448
      %v530 = vunpack.c.h.b16 %v448
      %v531 = vunpack.c.l.b16 %v449
      %v532 = vunpack.c.h.b16 %v449
      %v533 = vunpack.c.l.b16 %v450
      %v534 = vunpack.c.h.b16 %v450
      %v535 = vunpack.c.l.b16 %v451
      %v536 = vunpack.c.h.b16 %v451
      %v537 = vunpack.c.l.b16 %v452
      %v538 = vunpack.c.h.b16 %v452
      %v539 = vunpack.c.l.b16 %v453
      %v540 = vunpack.c.h.b16 %v453
      %v541 = vunpack.c.l.b16 %v454
      %v542 = vunpack.c.h.b16 %v454
      %v543 = vunpack.c.l.b16 %v455
      %v544 = vunpack.c.h.b16 %v455
      %v545 = vunpack.c.l.b16 %v456
      %v546 = vunpack.c.h.b16 %v456
      %v547 = vunpack.c.l.b16 %v457
      %v548 = vunpack.c.h.b16 %v457
      %v549 = vunpack.c.l.b16 %v458
      %v550 = vunpack.c.h.b16 %v458
      %v551 = vunpack.c.l.b16 %v459
      %v552 = vunpack.c.h.b16 %v459
      %v553 = vunpack.c.l.b16 %v460
      %v554 = vunpack.c.h.b16 %v460
      %v555 = vunpack.c.l.b16 %v461
      %v556 = vunpack.c.h.b16 %v461
      %v557 = vunpack.c.l.b16 %v462
      %v558 = vunpack.c.h.b16 %v462
      %v559 = vunpack.c.l.b16 %v463
      %v560 = vunpack.c.h.b16 %v463
      %v561 = vunpack.c.l.b16 %v464
      %v562 = vunpack.c.h.b16 %v464
      %v563 = vunpack.c.l.b16 %v465
      %v564 = vunpack.c.h.b16 %v465
      %v565 = vunpack.c.l.b16 %v466
      %v566 = vunpack.c.h.b16 %v466
      %v567 = vunpack.c.l.b16 %v467
      %v568 = vunpack.c.h.b16 %v467
      %v569 = vunpack.c.l.b16 %v468
      %v570 = vunpack.c.h.b16 %v468
      %v571 = vunpack.c.l.b16 %v469
      %v572 = vunpack.c.h.b16 %v469
      %v573 = vunpack.c.l.b16 %v470
      %v574 = vunpack.c.h.b16 %v470
      %v575 = vunpack.c.l.b16 %v471
      %v576 = vunpack.c.h.b16 %v471
      %v577 = vunpack.c.l.b16 %v472
      %v578 = vunpack.c.h.b16 %v472
      %v579 = vunpack.c.l.b16 %v473
      %v580 = vunpack.c.h.b16 %v473
      %v581 = vunpack.c.l.b16 %v474
      %v582 = vunpack.c.h.b16 %v474
      %v583 = vpack.c.b16 %v521, %v519
      %v584 = vpack.c.b16 %v522, %v520
      %v585 = vpack.c.b16 %v525, %v523
      %v586 = vpack.c.b16 %v526, %v524
      %v587 = vpack.c.b16 %v529, %v527
      %v588 = vpack.c.b16 %v530, %v528
      %v589 = vpack.c.b16 %v533, %v531
      %v590 = vpack.c.b16 %v534, %v532
      %v591 = vpack.c.b16 %v537, %v535
      %v592 = vpack.c.b16 %v538, %v536
      %v593 = vpack.c.b16 %v541, %v539
      %v594 = vpack.c.b16 %v542, %v540
      %v595 = vpack.c.b16 %v545, %v543
      %v596 = vpack.c.b16 %v546, %v544
      %v597 = vpack.c.b16 %v549, %v547
      %v598 = vpack.c.b16 %v550, %v548
      %v599 = vpack.c.b16 %v553, %v551
      %v600 = vpack.c.b16 %v554, %v552
      %v601 = vpack.c.b16 %v557, %v555
      %v602 = vpack.c.b16 %v558, %v556
      %v603 = vpack.c.b16 %v561, %v559
      %v604 = vpack.c.b16 %v562, %v560
      %v605 = vpack.c.b16 %v565, %v563
      %v606 = vpack.c.b16 %v566, %v564
      %v607 = vpack.c.b16 %v569, %v567
      %v608 = vpack.c.b16 %v570, %v568
      %v609 = vpack.c.b16 %v573, %v571
      %v610 = vpack.c.b16 %v574, %v572
      %v611 = vpack.c.b16 %v577, %v575
      %v612 = vpack.c.b16 %v578, %v576
      %v613 = vpack.c.b16 %v581, %v579
      %v614 = vpack.c.b16 %v582, %v580
      %647 = vmatprep.subr.bf16.mxu0 %v598
      %648 = vmatpush1.bf16.msra.mxu0 %v597
      %649 = vmatprep.subr.bf16.mxu0 %v596
      %650 = vmatpush1.bf16.msra.mxu0 %v595
      %651 = vmatprep.subr.bf16.mxu0 %v594
      %652 = vmatpush1.bf16.msra.mxu0 %v593
      %653 = vmatprep.subr.bf16.mxu0 %v592
      %654 = vmatpush1.bf16.msra.mxu0 %v591
      %655 = vmatprep.subr.bf16.mxu0 %v590
      %656 = vmatpush1.bf16.msra.mxu0 %v589
      %657 = vmatprep.subr.bf16.mxu0 %v588
      %658 = vmatpush1.bf16.msra.mxu0 %v587
      %659 = vmatprep.subr.bf16.mxu0 %v586
      %660 = vmatpush1.bf16.msra.mxu0 %v585
      %661 = vmatprep.subr.bf16.mxu0 %v584
      %662 = vmatpush1.bf16.msra.mxu0 %v583
      %663 = vmatprep.subr.bf16.mxu0 %v614
      %664 = vmatpush2.bf16.msra.mxu0 %v613
      %665 = vmatprep.subr.bf16.mxu0 %v612
      %666 = vmatpush2.bf16.msra.mxu0 %v611
      %667 = vmatprep.subr.bf16.mxu0 %v610
      %668 = vmatpush2.bf16.msra.mxu0 %v609
      %669 = vmatprep.subr.bf16.mxu0 %v608
      %670 = vmatpush2.bf16.msra.mxu0 %v607
      %671 = vmatprep.subr.bf16.mxu0 %v606
      %672 = vmatpush2.bf16.msra.mxu0 %v605
      %673 = vmatprep.subr.bf16.mxu0 %v604
      %674 = vmatpush2.bf16.msra.mxu0 %v603
      %675 = vmatprep.subr.bf16.mxu0 %v602
      %676 = vmatpush2.bf16.msra.mxu0 %v601
      %677 = vmatprep.subr.bf16.mxu0 %v600
      %678 = vmatpush2.bf16.msra.mxu0 %v599
      %679 = vmatprep.mubr.bf16.mxu0 %v442
      %680 = vmatmul.mubr.bf16.gmra.mxu0 %v441
      %v681 = vpop.f32.mrf.mxu0
      %v682 = vadd.f32 %v480, %v681
      %v683 = vpop.f32.mrf.mxu0
      %v684 = vadd.f32 %v484, %v683
      %v685 = vpop.f32.mrf.mxu0
      %v686 = vadd.f32 %v480, %v685
      %v687 = vpop.f32.mrf.mxu0
      %v688 = vadd.f32 %v484, %v687
      %689 = vdwg.mxu0
      %v690 = vmax.f32 %v682, 0.0
      %v691 = vmax.f32 %v684, 0.0
      %v692 = vmax.f32 %v686, 0.0
      %v693 = vmax.f32 %v688, 0.0
      %v694 = vpack.c.bf16 %v692, %v690
      %v695 = vpack.c.bf16 %v693, %v691
      %v696 = vld [vmem:[%s5] sm:$0xf]
      %v697 = vld [vmem:[%s5 + $0x4] sm:$0xf]
      %v698 = vld [vmem:[%s5 + $0x8] sm:$0xf]
      %v699 = vld [vmem:[%s5 + $0xc] sm:$0xf]
      %v700 = vld [vmem:[%s5 + $0x10] sm:$0xf]
      %v701 = vld [vmem:[%s5 + $0x14] sm:$0xf]
      %v702 = vld [vmem:[%s5 + $0x18] sm:$0xf]
      %v703 = vld [vmem:[%s5 + $0x1c] sm:$0xf]
      %v704 = vld [vmem:[%s5 + $0x20] sm:$0xf]
      %v705 = vld [vmem:[%s5 + $0x24] sm:$0xf]
      %v706 = vld [vmem:[%s5 + $0x28] sm:$0xf]
      %v707 = vld [vmem:[%s5 + $0x2c] sm:$0xf]
      %v708 = vld [vmem:[%s5 + $0x30] sm:$0xf]
      %v709 = vld [vmem:[%s5 + $0x34] sm:$0xf]
      %v710 = vld [vmem:[%s5 + $0x38] sm:$0xf]
      %v711 = vld [vmem:[%s5 + $0x3c] sm:$0xf]
      %v712 = vld [vmem:[%s5 + $0x40] sm:$0xf]
      %v713 = vld [vmem:[%s5 + $0x44] sm:$0xf]
      %v714 = vld [vmem:[%s5 + $0x48] sm:$0xf]
      %v715 = vld [vmem:[%s5 + $0x4c] sm:$0xf]
      %v716 = vld [vmem:[%s5 + $0x50] sm:$0xf]
      %v717 = vld [vmem:[%s5 + $0x54] sm:$0xf]
      %v718 = vld [vmem:[%s5 + $0x58] sm:$0xf]
      %v719 = vld [vmem:[%s5 + $0x5c] sm:$0xf]
      %v720 = vld [vmem:[%s5 + $0x60] sm:$0xf]
      %v721 = vld [vmem:[%s5 + $0x64] sm:$0xf]
      %v722 = vld [vmem:[%s5 + $0x68] sm:$0xf]
      %v723 = vld [vmem:[%s5 + $0x6c] sm:$0xf]
      %v724 = vld [vmem:[%s5 + $0x70] sm:$0xf]
      %v725 = vld [vmem:[%s5 + $0x74] sm:$0xf]
      %v726 = vld [vmem:[%s5 + $0x78] sm:$0xf]
      %v727 = vld [vmem:[%s5 + $0x7c] sm:$0xf]
      %v728 = vld [vmem:[%s6] sm:$0x1]
      %v730 = vlaneseq
      %v731 = vshrl.u32 %v730, 7
      %v732 = vsub.s32 0, %v731
      %v733 = vrot.slane %v728, %v732
      %v767 = vunpack.c.l.b16 %v696
      %v768 = vunpack.c.l.b16 %v697
      %v769 = vunpack.c.l.b16 %v698
      %v770 = vunpack.c.l.b16 %v699
      %v771 = vunpack.c.l.b16 %v700
      %v772 = vunpack.c.l.b16 %v701
      %v773 = vunpack.c.l.b16 %v702
      %v774 = vunpack.c.l.b16 %v703
      %v775 = vunpack.c.l.b16 %v704
      %v776 = vunpack.c.l.b16 %v705
      %v777 = vunpack.c.l.b16 %v706
      %v778 = vunpack.c.l.b16 %v707
      %v779 = vunpack.c.l.b16 %v708
      %v780 = vunpack.c.l.b16 %v709
      %v781 = vunpack.c.l.b16 %v710
      %v782 = vunpack.c.l.b16 %v711
      %v783 = vunpack.c.l.b16 %v712
      %v784 = vunpack.c.l.b16 %v713
      %v785 = vunpack.c.l.b16 %v714
      %v786 = vunpack.c.l.b16 %v715
      %v787 = vunpack.c.l.b16 %v716
      %v788 = vunpack.c.l.b16 %v717
      %v789 = vunpack.c.l.b16 %v718
      %v790 = vunpack.c.l.b16 %v719
      %v791 = vunpack.c.l.b16 %v720
      %v792 = vunpack.c.l.b16 %v721
      %v793 = vunpack.c.l.b16 %v722
      %v794 = vunpack.c.l.b16 %v723
      %v795 = vunpack.c.l.b16 %v724
      %v796 = vunpack.c.l.b16 %v725
      %v797 = vunpack.c.l.b16 %v726
      %v798 = vunpack.c.l.b16 %v727
      %v799 = vpack.c.b16 %v768, %v767
      %v800 = vpack.c.b16 %v770, %v769
      %v801 = vpack.c.b16 %v772, %v771
      %v802 = vpack.c.b16 %v774, %v773
      %v803 = vpack.c.b16 %v776, %v775
      %v804 = vpack.c.b16 %v778, %v777
      %v805 = vpack.c.b16 %v780, %v779
      %v806 = vpack.c.b16 %v782, %v781
      %v807 = vpack.c.b16 %v784, %v783
      %v808 = vpack.c.b16 %v786, %v785
      %v809 = vpack.c.b16 %v788, %v787
      %v810 = vpack.c.b16 %v790, %v789
      %v811 = vpack.c.b16 %v792, %v791
      %v812 = vpack.c.b16 %v794, %v793
      %v813 = vpack.c.b16 %v796, %v795
      %v814 = vpack.c.b16 %v798, %v797
      %831 = vmatprep.subr.bf16.mxu0 0
      %832 = vmatpush1.bf16.msra.mxu0 %v806
      %833 = vmatprep.subr.bf16.mxu0 0
      %834 = vmatpush1.bf16.msra.mxu0 %v805
      %835 = vmatprep.subr.bf16.mxu0 0
      %836 = vmatpush1.bf16.msra.mxu0 %v804
      %837 = vmatprep.subr.bf16.mxu0 0
      %838 = vmatpush1.bf16.msra.mxu0 %v803
      %839 = vmatprep.subr.bf16.mxu0 0
      %840 = vmatpush1.bf16.msra.mxu0 %v802
      %841 = vmatprep.subr.bf16.mxu0 0
      %842 = vmatpush1.bf16.msra.mxu0 %v801
      %843 = vmatprep.subr.bf16.mxu0 0
      %844 = vmatpush1.bf16.msra.mxu0 %v800
      %845 = vmatprep.subr.bf16.mxu0 0
      %846 = vmatpush1.bf16.msra.mxu0 %v799
      %847 = vmatprep.subr.bf16.mxu0 0
      %848 = vmatpush2.bf16.msra.mxu0 %v814
      %849 = vmatprep.subr.bf16.mxu0 0
      %850 = vmatpush2.bf16.msra.mxu0 %v813
      %851 = vmatprep.subr.bf16.mxu0 0
      %852 = vmatpush2.bf16.msra.mxu0 %v812
      %853 = vmatprep.subr.bf16.mxu0 0
      %854 = vmatpush2.bf16.msra.mxu0 %v811
      %855 = vmatprep.subr.bf16.mxu0 0
      %856 = vmatpush2.bf16.msra.mxu0 %v810
      %857 = vmatprep.subr.bf16.mxu0 0
      %858 = vmatpush2.bf16.msra.mxu0 %v809
      %859 = vmatprep.subr.bf16.mxu0 0
      %860 = vmatpush2.bf16.msra.mxu0 %v808
      %861 = vmatprep.subr.bf16.mxu0 0
      %862 = vmatpush2.bf16.msra.mxu0 %v807
      %863 = vmatprep.mubr.bf16.mxu0 %v695
      %864 = vmatmul.mubr.bf16.gmra.mxu0 %v694
      %v865 = vpop.f32.mrf.mxu0
      %v866 = vadd.f32 %v733, %v865
      %v867 = vpop.f32.mrf.mxu0
      %v868 = vpop.f32.mrf.mxu0
      %v869 = vadd.f32 %v733, %v868
      %v870 = vpop.f32.mrf.mxu0
      %871 = vdwg.mxu0
      %v872 = vmax.f32 %v866, 0.0
      %v873 = vmax.f32 %v869, 0.0
      %v874 = vadd.f32 %v872, %v283
      %v875 = vadd.f32 %v873, %v284
      %876 = vst [vmem:[%s280] sm:$0xff] %v874
      %877 = vst [vmem:[%s280 + $0x8] sm:$0xff] %v875
      %s878 = smul.u32 2, %s18
      %p879 = scmp.lt.s32.totalorder %s878, 3
      %s880 = scalar_select %p879, %s878, 3
      %s881 = smul.addr %s880, 8
      %s882 = scalar_lea.vmem %s7, %s881
      // Predicated region
      $region49: #{feature_transfer.1} parent=47 // pred_check
        %p883 = pneg %p188
      $region50: #{feature_transfer.1} parent=47 // pred_check_branch
        %885 = sbr.rel (%p883) target = $region52
      $region51: #{feature_transfer.1} parent=47 // pred_region
        %s886 = smul.u32 2, %s18
      $region52: #{feature_transfer.1} parent=47 // pred_fallthru
        _
    $region48: #{feature_transfer.1} parent=5 // pred_fallthru
      _
    %p887 = scmp.le.s32.totalorder 2, %s13
    // Predicated region
    $region53: #{feature_transfer.1} parent=5 // pred_check
      %p888 = pneg %p887
    $region54: #{feature_transfer.1} parent=5 // pred_check_branch
      %890 = sbr.rel (%p888) target = $region56
    $region55: #{feature_transfer.1} parent=5 // pred_region
      %s891 = ssub.s32 %s13, 2
      // Predicated region
      $region57: #{feature_transfer.1} parent=55 // pred_check
        %p892 = pneg %p194
      $region58: #{feature_transfer.1} parent=55 // pred_check_branch
        %894 = sbr.rel (%p892) target = $region60
      $region59: #{feature_transfer.1} parent=55 // pred_region
        %s895 = smul.u32 2, %s19
        %p896 = scmp.lt.s32.totalorder %s895, 3
        %s897 = scalar_select %p896, %s895, 3
        %s898 = smul.addr %s897, 8
        %s899 = scalar_lea.vmem %s7, %s898
      $region60: #{feature_transfer.1} parent=55 // pred_fallthru
        _
    $region56: #{feature_transfer.1} parent=5 // pred_fallthru
      _
  $region6: #{feature_transfer.1} parent=0 // loop_footer
    %s17 = sadd.s32 1, %s13
  $region7: #{feature_transfer.1} parent=0 // loop_footer_branch
    %12 = sbr.rel target = $region3
  $region8: #{feature_transfer.1} parent=0 // loop_exit
    _

</llo_original>
